<compile_context>
chip_gen: v6e
topology: v6e:2x2x1
jax: 0.10.0
libtpu: 0.0.40
codegen_flags: <defaults>
</compile_context>

<pallas_src>
import jax
import jax.numpy as jnp
from jax.experimental import pallas as pl
from jax.experimental.pallas import tpu as pltpu

# ---- hyper-parameters (small, consistent with the module) ----
VOCAB_SIZE = 50
EMBED_DIM = 32
POS_SIZE = 20
POS_DIM = 8
FEAT = EMBED_DIM + 2 * POS_DIM        # 48
NUM_FILTERS = 16
REL_NUM = 5
SEQ_LEN = 79                          # (79 + 2*2 - 3 + 1) = 81 = 27*3 -> MaxPool1d(27) yields 1
HOUT = SEQ_LEN + 2                    # conv output height = 81
HPAD = SEQ_LEN + 4                    # 83 (rows seen by the 3 kh taps)
WPAD = FEAT + 4                       # 52
GATHER_K = VOCAB_SIZE + 2 * POS_SIZE  # 90 (word | pf1 | pf2 stacked along K)
NWOUT = 3                             # conv W-outputs surviving MaxPool2d(3,3): w in {0,1,2}
NKH = 3                               # conv kernel-height taps
NCOL = NWOUT * NUM_FILTERS            # 48 columns per kh block

# The fused pooling (single max over h<81, w<3) is only equivalent to
# MaxPool2d(3,3) + MaxPool1d(27) for these exact sizes -- guard it.
assert HOUT == 81 and HOUT == 27 * 3, "fused pooling requires conv H-out == 81 == 27*3"
assert WPAD - FEAT + 1 == 5, "fused pooling requires conv W-out == 5 (keeps w in {0,1,2})"


def cnn_kernel(ids_ref, a_ref, b_ref, wl_ref, bl_ref, o_ref):
    """One sentence per grid step.
    ids_ref: [HPAD, 3] i32 packed (word | pf1 | pf2) range-offset ids; -1 = pad row.
    a_ref:   [GATHER_K, NKH*NCOL] bf16 -- embedding tables pre-multiplied by the
             conv weights, with both the 3 surviving W offsets and the 3 kh taps
             folded into the lane axis.
    b_ref:   [1, NCOL] f32   wl_ref: [NF, REL] bf16   bl_ref: [1, REL] f32
    o_ref:   [1, REL] f32
    """
    ids = ids_ref[...]                                                  # [83, 3]
    lane = jax.lax.broadcasted_iota(jnp.int32, (HPAD, GATHER_K), 1)
    # "3-hot" selection matrix built ONCE over all padded rows; sentinel -1 rows
    # (conv H zero-padding) select nothing -> zero rows.
    sel = ((lane == ids[:, 0:1]) |
           (lane == ids[:, 1:2]) |
           (lane == ids[:, 2:3])).astype(jnp.bfloat16)                  # [83, 90]
    # One MXU matmul covering all three kh taps (folded into 144 output lanes).
    x = jnp.dot(sel, a_ref[...], preferred_element_type=jnp.float32)    # [83, 144]
    # Shift-and-add the kh blocks back onto the 81 conv-output rows.
    acc = (x[0:HOUT, 0:NCOL]
           + x[1:HOUT + 1, NCOL:2 * NCOL]
           + x[2:HOUT + 2, 2 * NCOL:3 * NCOL])                          # [81, 48]
    y = jnp.maximum(acc + b_ref[...], 0.0)                              # ReLU
    ymax = jnp.max(y, axis=0, keepdims=True)                            # max over h, [1, 48]
    # max over the 3 conv W-offsets (filter groups of 16 lanes)
    pooled = jnp.maximum(
        jnp.maximum(ymax[:, 0:NUM_FILTERS], ymax[:, NUM_FILTERS:2 * NUM_FILTERS]),
        ymax[:, 2 * NUM_FILTERS:3 * NUM_FILTERS])                       # [1, NF]
    # Dropout (eval) is identity.  Linear + softmax.
    logits = jnp.dot(pooled.astype(jnp.bfloat16), wl_ref[...],
                     preferred_element_type=jnp.float32) + bl_ref[...]
    m = jnp.max(logits, axis=-1, keepdims=True)
    e = jnp.exp(logits - m)
    o_ref[...] = e * pl.reciprocal(jnp.sum(e, axis=-1, keepdims=True), approx=True)


def preprocess_params(params):
    """One-time preprocessing: fold the 3 surviving conv W offsets AND the 3 kh taps
    into the output (lane) axis and pre-multiply the embedding tables by the conv
    weights, so the kernel only does one 3-hot-gather matmul per sentence."""
    # conv weight [NF, 1, 3, FEAT] -> per-kh [FEAT, NF]
    wk = jnp.transpose(params["w1"][:, 0], (1, 2, 0)).astype(jnp.float32)   # [3, FEAT, NF]
    # Folded weight: wfold[kh, c, g*NF + f] = W[f, kh, c-g] if 0 <= c-g < FEAT else 0
    wfold = jnp.zeros((NKH, WPAD, NCOL), jnp.float32)
    for kh in range(NKH):
        for g in range(NWOUT):
            wfold = wfold.at[kh, g:g + FEAT,
                             g * NUM_FILTERS:(g + 1) * NUM_FILTERS].set(wk[kh])
    # x_pad column layout: [0,1]=zero pad, [2,34)=word, [34,42)=pf1, [42,50)=pf2, [50,51]=pad
    c0 = 2
    aw = jnp.einsum("ve,kef->kvf", params["word_emb"],
                    wfold[:, c0:c0 + EMBED_DIM, :])                          # [3, 50, 48]
    ap1 = jnp.einsum("ve,kef->kvf", params["pos1_emb"],
                     wfold[:, c0 + EMBED_DIM:c0 + EMBED_DIM + POS_DIM, :])   # [3, 20, 48]
    ap2 = jnp.einsum("ve,kef->kvf", params["pos2_emb"],
                     wfold[:, c0 + EMBED_DIM + POS_DIM:c0 + FEAT, :])        # [3, 20, 48]
    a_all = jnp.concatenate([aw, ap1, ap2], axis=1)                          # [3, 90, 48]
    # fold kh into the lane axis: a_cat[v, kh*NCOL + n] = a_all[kh, v, n]
    a_cat = jnp.concatenate([a_all[0], a_all[1], a_all[2]], axis=1)          # [90, 144]
    return {
        "a_cat": a_cat.astype(jnp.bfloat16),                                 # [90, 144] bf16
        "b48": jnp.tile(params["b1"], NWOUT)[None, :].astype(jnp.float32),   # [1, 48]
        "w_lin": params["w_lin"].astype(jnp.bfloat16),                       # [NF, REL] bf16
        "bl": params["b_lin"][None, :].astype(jnp.float32),                  # [1, REL]
    }


def _pack_ids(insX_b, insPFs_b):
    """[B,S] word ids + [B,2,S] position ids -> padded packed [B, HPAD, 3] i32.
    2-row zero padding of the conv H axis == sentinel -1 (matches no table row)."""
    wid = insX_b.astype(jnp.int32)                                    # ids in [0, 50)
    p1 = insPFs_b[:, 0].astype(jnp.int32) + VOCAB_SIZE                # ids in [50, 70)
    p2 = insPFs_b[:, 1].astype(jnp.int32) + VOCAB_SIZE + POS_SIZE     # ids in [70, 90)
    ids = jnp.stack([wid, p1, p2], axis=-1)                           # [B, S, 3]
    return jnp.pad(ids, ((0, 0), (2, 2), (0, 0)), constant_values=-1)


@jax.jit
def cnn_forward_batch(insX_b, insPFs_b, prep):
    """Batched forward: insX_b [B, SEQ_LEN], insPFs_b [B, 2, SEQ_LEN] -> [B, REL_NUM]."""
    B = insX_b.shape[0]
    ids = _pack_ids(insX_b, insPFs_b)                                 # [B, HPAD, 3]
    out = pl.pallas_call(
        cnn_kernel,
        out_shape=jax.ShapeDtypeStruct((B, 1, REL_NUM), jnp.float32),
        grid=(B,),
        in_specs=[
            pl.BlockSpec((None, HPAD, 3), lambda b: (b, 0, 0)),       # per-sentence ids
            pl.BlockSpec((GATHER_K, NKH * NCOL), lambda b: (0, 0)),   # resident weights
            pl.BlockSpec((1, NCOL), lambda b: (0, 0)),
            pl.BlockSpec((NUM_FILTERS, REL_NUM), lambda b: (0, 0)),
            pl.BlockSpec((1, REL_NUM), lambda b: (0, 0)),
        ],
        out_specs=pl.BlockSpec((None, 1, REL_NUM), lambda b: (b, 0, 0)),
        compiler_params=pltpu.CompilerParams(
            dimension_semantics=("parallel",)),                       # 2 TCs on v7x
    )(ids, prep["a_cat"], prep["b48"], prep["w_lin"], prep["bl"])
    return out[:, 0, :]                                               # [B, REL_NUM]


def cnn_forward(insX, insPFs, prep):
    """Single-sentence forward, matching the PyTorch module's [1, rel_num] output."""
    return cnn_forward_batch(insX[None], insPFs[None], prep)          # [1, REL_NUM]


def reference_forward(insX, insPFs, params):
    """Pure-JAX reference mirroring the PyTorch forward exactly (f32)."""
    word_emb = params["word_emb"][insX]
    pf1_emb = params["pos1_emb"][insPFs[0]]
    pf2_emb = params["pos2_emb"][insPFs[1]]
    x = jnp.concatenate([word_emb, pf1_emb, pf2_emb], axis=1)[None, None]   # NCHW
    y = jax.lax.conv_general_dilated(
        x, params["w1"], window_strides=(1, 1), padding=((2, 2), (2, 2)),
        dimension_numbers=("NCHW", "OIHW", "NCHW"))
    y = jnp.maximum(y + params["b1"][None, :, None, None], 0.0)[0]          # [NF, 81, 5]
    y = jax.lax.reduce_window(y, -jnp.inf, jax.lax.max, (1, 3, 3), (1, 3, 3), "VALID")
    y = y[:, :, 0]                                                          # [NF, 27]
    y = jax.lax.reduce_window(y, -jnp.inf, jax.lax.max, (1, 27), (1, 27), "VALID")
    feat = y[:, 0]                                                          # [NF]
    logits = feat @ params["w_lin"] + params["b_lin"]
    return jax.nn.softmax(logits)[None]                                     # [1, REL]


def init_params(key):
    # TODO(synk): the module loads pretrained word/pos embeddings from .npy files
    # (init_word_emb); replaced with random init since no file I/O is allowed here.
    ks = jax.random.split(key, 7)
    return {
        "word_emb": jax.random.normal(ks[0], (VOCAB_SIZE, EMBED_DIM), jnp.float32) * 0.1,
        "pos1_emb": jax.random.normal(ks[1], (POS_SIZE, POS_DIM), jnp.float32) * 0.1,
        "pos2_emb": jax.random.normal(ks[2], (POS_SIZE, POS_DIM), jnp.float32) * 0.1,
        "w1": jax.random.normal(ks[3], (NUM_FILTERS, 1, 3, FEAT), jnp.float32) * 0.1,
        "b1": jax.random.normal(ks[4], (NUM_FILTERS,), jnp.float32) * 0.1,
        "w_lin": jax.random.normal(ks[5], (NUM_FILTERS, REL_NUM), jnp.float32) * 0.1,
        "b_lin": jax.random.normal(ks[6], (REL_NUM,), jnp.float32) * 0.1,
    }


if __name__ == "__main__":
    key = jax.random.PRNGKey(0)
    kp, kx, kpf = jax.random.split(key, 3)
    params = init_params(kp)
    prep = preprocess_params(params)          # one-time weight folding / bf16 cast

    B = 4                                     # small batch of sentences
    insX_b = jax.random.randint(kx, (B, SEQ_LEN), 0, VOCAB_SIZE, dtype=jnp.int32)
    insPFs_b = jax.random.randint(kpf, (B, 2, SEQ_LEN), 0, POS_SIZE, dtype=jnp.int32)

    # batched kernel run (grid over sentences, weights resident in VMEM)
    out_b = jax.block_until_ready(cnn_forward_batch(insX_b, insPFs_b, prep))
    assert out_b.shape == (B, REL_NUM)

    # single-sentence path (matches the PyTorch module's [1, rel_num] output)
    out_1 = jax.block_until_ready(cnn_forward(insX_b[0], insPFs_b[0], prep))
    assert out_1.shape == (1, REL_NUM)

    # correctness vs. the pure-JAX f32 reference (bf16 tables -> loosened tolerance)
    for b in range(B):
        ref = jax.block_until_ready(reference_forward(insX_b[b], insPFs_b[b], params))
        assert jnp.allclose(out_b[b:b + 1], ref, rtol=2e-2, atol=2e-3), (b, out_b[b], ref)
    assert jnp.allclose(out_1, out_b[0:1], rtol=1e-5, atol=1e-6)

    print("KERNEL_OK")
</pallas_src>

<mosaic_0001>
module attributes {stable_mosaic.version = 11 : i64} {
  func.func @cnn_kernel(%arg0: i32, %arg1: memref<1x83x3xi32, #tpu.memory_space<vmem>>, %arg2: memref<90x144xbf16, #tpu.memory_space<vmem>>, %arg3: memref<1x48xf32, #tpu.memory_space<vmem>>, %arg4: memref<16x5xbf16, #tpu.memory_space<vmem>>, %arg5: memref<1x5xf32, #tpu.memory_space<vmem>>, %arg6: memref<1x1x5xf32, #tpu.memory_space<vmem>>) attributes {dimension_semantics = [#tpu.dimension_semantics<parallel>], iteration_bounds = array<i64: 4>, scalar_prefetch = 0 : i64, scratch_operands = 0 : i64, tpu.core_type = #tpu.core_type<tc>, window_params = [{transform_indices = @transform_0, window_bounds = array<i64: 1, 83, 3>}, {pipeline_mode = #tpu.pipeline_mode<synchronous>, transform_indices = @transform_1, window_bounds = array<i64: 90, 144>}, {pipeline_mode = #tpu.pipeline_mode<synchronous>, transform_indices = @transform_2, window_bounds = array<i64: 1, 48>}, {pipeline_mode = #tpu.pipeline_mode<synchronous>, transform_indices = @transform_3, window_bounds = array<i64: 16, 5>}, {pipeline_mode = #tpu.pipeline_mode<synchronous>, transform_indices = @transform_4, window_bounds = array<i64: 1, 5>}, {transform_indices = @transform_5, window_bounds = array<i64: 1, 1, 5>}]} {
    %c0 = arith.constant 0 : index
    %c0_0 = arith.constant 0 : index
    %c0_1 = arith.constant 0 : index
    %0 = vector.load %arg1[%c0, %c0_0, %c0_1] : memref<1x83x3xi32, #tpu.memory_space<vmem>>, vector<1x83x3xi32>
    %1 = vector.shape_cast %0 : vector<1x83x3xi32> to vector<83x3xi32>
    %2 = tpu.iota {dimensions = array<i32: 1>} : vector<83x90xi32>
    %3 = vector.extract_strided_slice %1 {offsets = [0, 0], sizes = [83, 1], strides = [1, 1]} : vector<83x3xi32> to vector<83x1xi32>
    %4 = vector.broadcast %3 : vector<83x1xi32> to vector<83x90xi32>
    %5 = arith.cmpi eq, %2, %4 : vector<83x90xi32>
    %6 = vector.extract_strided_slice %1 {offsets = [0, 1], sizes = [83, 1], strides = [1, 1]} : vector<83x3xi32> to vector<83x1xi32>
    %7 = vector.broadcast %6 : vector<83x1xi32> to vector<83x90xi32>
    %8 = arith.cmpi eq, %2, %7 : vector<83x90xi32>
    %9 = arith.ori %5, %8 : vector<83x90xi1>
    %10 = vector.extract_strided_slice %1 {offsets = [0, 2], sizes = [83, 1], strides = [1, 1]} : vector<83x3xi32> to vector<83x1xi32>
    %11 = vector.broadcast %10 : vector<83x1xi32> to vector<83x90xi32>
    %12 = arith.cmpi eq, %2, %11 : vector<83x90xi32>
    %13 = arith.ori %9, %12 : vector<83x90xi1>
    %14 = arith.extui %13 : vector<83x90xi1> to vector<83x90xi32>
    %15 = arith.sitofp %14 : vector<83x90xi32> to vector<83x90xf32>
    %16 = arith.truncf %15 : vector<83x90xf32> to vector<83x90xbf16>
    %c0_2 = arith.constant 0 : index
    %c0_3 = arith.constant 0 : index
    %17 = vector.load %arg2[%c0_2, %c0_3] : memref<90x144xbf16, #tpu.memory_space<vmem>>, vector<90x144xbf16>
    %cst = arith.constant dense<0.000000e+00> : vector<83x144xf32>
    %18 = tpu.matmul %16, %17, %cst {dimension_numbers = #tpu.dot_dimension_numbers<[1], [0], [0], [1], [0, 0, 1, 1], [], []>} : vector<83x90xbf16>, vector<90x144xbf16>, vector<83x144xf32> -> vector<83x144xf32>
    %19 = vector.extract_strided_slice %18 {offsets = [0, 0], sizes = [81, 48], strides = [1, 1]} : vector<83x144xf32> to vector<81x48xf32>
    %20 = vector.extract_strided_slice %18 {offsets = [1, 48], sizes = [81, 48], strides = [1, 1]} : vector<83x144xf32> to vector<81x48xf32>
    %21 = arith.addf %19, %20 : vector<81x48xf32>
    %22 = vector.extract_strided_slice %18 {offsets = [2, 96], sizes = [81, 48], strides = [1, 1]} : vector<83x144xf32> to vector<81x48xf32>
    %23 = arith.addf %21, %22 : vector<81x48xf32>
    %c0_4 = arith.constant 0 : index
    %c0_5 = arith.constant 0 : index
    %24 = vector.load %arg3[%c0_4, %c0_5] : memref<1x48xf32, #tpu.memory_space<vmem>>, vector<1x48xf32>
    %25 = vector.broadcast %24 : vector<1x48xf32> to vector<81x48xf32>
    %26 = arith.addf %23, %25 : vector<81x48xf32>
    %cst_6 = arith.constant 0.000000e+00 : f32
    %27 = vector.broadcast %cst_6 : f32 to vector<81x48xf32>
    %28 = arith.maximumf %26, %27 : vector<81x48xf32>
    %cst_7 = arith.constant dense<0xFF800000> : vector<48xf32>
    %29 = vector.multi_reduction <maximumf>, %28, %cst_7 [0] : vector<81x48xf32> to vector<48xf32>
    %30 = vector.shape_cast %29 : vector<48xf32> to vector<1x48xf32>
    %31 = vector.extract_strided_slice %30 {offsets = [0, 0], sizes = [1, 16], strides = [1, 1]} : vector<1x48xf32> to vector<1x16xf32>
    %32 = vector.extract_strided_slice %30 {offsets = [0, 16], sizes = [1, 16], strides = [1, 1]} : vector<1x48xf32> to vector<1x16xf32>
    %33 = arith.maximumf %31, %32 : vector<1x16xf32>
    %34 = vector.extract_strided_slice %30 {offsets = [0, 32], sizes = [1, 16], strides = [1, 1]} : vector<1x48xf32> to vector<1x16xf32>
    %35 = arith.maximumf %33, %34 : vector<1x16xf32>
    %36 = arith.truncf %35 : vector<1x16xf32> to vector<1x16xbf16>
    %c0_8 = arith.constant 0 : index
    %c0_9 = arith.constant 0 : index
    %37 = vector.load %arg4[%c0_8, %c0_9] : memref<16x5xbf16, #tpu.memory_space<vmem>>, vector<16x5xbf16>
    %cst_10 = arith.constant dense<0.000000e+00> : vector<1x5xf32>
    %38 = tpu.matmul %36, %37, %cst_10 {dimension_numbers = #tpu.dot_dimension_numbers<[1], [0], [0], [1], [0, 0, 1, 1], [], []>} : vector<1x16xbf16>, vector<16x5xbf16>, vector<1x5xf32> -> vector<1x5xf32>
    %c0_11 = arith.constant 0 : index
    %c0_12 = arith.constant 0 : index
    %39 = vector.load %arg5[%c0_11, %c0_12] : memref<1x5xf32, #tpu.memory_space<vmem>>, vector<1x5xf32>
    %40 = arith.addf %38, %39 : vector<1x5xf32>
    %cst_13 = arith.constant dense<0xFF800000> : vector<1xf32>
    %41 = vector.multi_reduction <maximumf>, %40, %cst_13 [1] : vector<1x5xf32> to vector<1xf32>
    %42 = vector.shape_cast %41 : vector<1xf32> to vector<1x1xf32>
    %43 = vector.broadcast %42 : vector<1x1xf32> to vector<1x5xf32>
    %44 = arith.subf %40, %43 : vector<1x5xf32>
    %45 = math.exp %44 : vector<1x5xf32>
    %cst_14 = arith.constant dense<0.000000e+00> : vector<1xf32>
    %46 = vector.multi_reduction <add>, %45, %cst_14 [1] : vector<1x5xf32> to vector<1xf32>
    %47 = vector.shape_cast %46 : vector<1xf32> to vector<1x1xf32>
    %48 = tpu.reciprocal %47 {approx = true} : vector<1x1xf32> -> vector<1x1xf32>
    %49 = vector.broadcast %48 : vector<1x1xf32> to vector<1x5xf32>
    %50 = arith.mulf %45, %49 : vector<1x5xf32>
    %c0_15 = arith.constant 0 : index
    %c0_16 = arith.constant 0 : index
    %c0_17 = arith.constant 0 : index
    %51 = vector.load %arg6[%c0_15, %c0_16, %c0_17] : memref<1x1x5xf32, #tpu.memory_space<vmem>>, vector<1x1x5xf32>
    %52 = vector.shape_cast %51 : vector<1x1x5xf32> to vector<1x5xf32>
    %53 = vector.shape_cast %50 : vector<1x5xf32> to vector<1x1x5xf32>
    tpu.vector_store %arg6[%c0_15, %c0_16, %c0_17], %53 {strides = array<i32>} : memref<1x1x5xf32, #tpu.memory_space<vmem>>, vector<1x1x5xf32>,
    return
  }
  func.func @transform_0(%arg0: i32) -> (i32, i32, i32) {
    %c0_i32 = arith.constant 0 : i32
    %c0_i32_0 = arith.constant 0 : i32
    %c0_i32_1 = arith.constant 0 : i32
    return %arg0, %c0_i32, %c0_i32_0 : i32, i32, i32
  }
  func.func @transform_1(%arg0: i32) -> (i32, i32) {
    %c0_i32 = arith.constant 0 : i32
    %c0_i32_0 = arith.constant 0 : i32
    %c0_i32_1 = arith.constant 0 : i32
    return %c0_i32, %c0_i32_0 : i32, i32
  }
  func.func @transform_2(%arg0: i32) -> (i32, i32) {
    %c0_i32 = arith.constant 0 : i32
    %c0_i32_0 = arith.constant 0 : i32
    %c0_i32_1 = arith.constant 0 : i32
    return %c0_i32, %c0_i32_0 : i32, i32
  }
  func.func @transform_3(%arg0: i32) -> (i32, i32) {
    %c0_i32 = arith.constant 0 : i32
    %c0_i32_0 = arith.constant 0 : i32
    %c0_i32_1 = arith.constant 0 : i32
    return %c0_i32, %c0_i32_0 : i32, i32
  }
  func.func @transform_4(%arg0: i32) -> (i32, i32) {
    %c0_i32 = arith.constant 0 : i32
    %c0_i32_0 = arith.constant 0 : i32
    %c0_i32_1 = arith.constant 0 : i32
    return %c0_i32, %c0_i32_0 : i32, i32
  }
  func.func @transform_5(%arg0: i32) -> (i32, i32, i32) {
    %c0_i32 = arith.constant 0 : i32
    %c0_i32_0 = arith.constant 0 : i32
    %c0_i32_1 = arith.constant 0 : i32
    return %arg0, %c0_i32, %c0_i32_0 : i32, i32, i32
  }
}

</mosaic_0001>

<llo_original>
// kernel: cnn_forward_batch.1
$region0: #{cnn_forward_batch.1}
  #allocation0 [shape = 'u32[]', space=smem, size = 0x4, offset = 0x4, fixed_abs, tag = 'smem constant byte address 0x4 - core index']
  #allocation1 [shape = 'u32[144,128]{1,0:T(1,128)}', space=vmem, size = 0x12000, scoped, tag = 'internal scratch']
  %s0 = inlined_call_operand.vmem [shape: s32[4,83,3], index: 0, kind: input, shape index: {}]
  %s1 = inlined_call_operand.vmem [shape: bf16[90,144], index: 1, kind: input, shape index: {}]
  %s2 = inlined_call_operand.vmem [shape: f32[1,48], index: 2, kind: input, shape index: {}]
  %s3 = inlined_call_operand.vmem [shape: bf16[16,5], index: 3, kind: input, shape index: {}]
  %s4 = inlined_call_operand.vmem [shape: f32[1,5], index: 4, kind: input, shape index: {}]
  %s5 = inlined_call_operand.hbm [shape: f32[4,1,5], index: 5, kind: output, shape index: {}]
  %s6 = sld [smem:[#allocation0]]
  $region53: #{cnn_forward_batch.1} parent=0
    _
  %s8 = ssub.s32 1, %s6
  %s9 = scalar_select 0, %s8, %s6
  $region1: #{cnn_forward_batch.1} parent=0
    #allocation2 [shape = 'u8[1024]{0}', space=vmem, size = 0x400, scoped, tag = 'output window, operand 0']
    #allocation3 [shape = 's32[2]{0}', space=sflag, size = 0x8, scoped, tag = 'scoped memory for cnn_forward_batch.1']
    %10 = vsyncpa [#allocation3], 0
    %s11 = scalar_lea.sflag [#allocation3], 1
    %12 = vsyncpa %s11, 0
    loop: start=0, step=1, limit=6
    $region2: #{cnn_forward_batch.1} parent=1 // loop_pre_header
      _
    $region3: #{cnn_forward_batch.1} parent=1 // loop_header
      %s14 = sphi 0, %s18
      %p15 = scmp.ge.s32.totalorder %s14, 6
      %s24 = sphi 0, %s26
      %s27 = sphi 0, %s24
      %s28 = sphi 0, %s27
      %s44 = sphi 0, %s28
      %s48 = sphi 0, %s48
      %s50 = sphi 0, %s48
      %s51 = sphi 0, %s50
      %s65 = sphi 0, %s51
      %s69 = sphi 0, %s69
      %s71 = sphi 0, %s69
      %s72 = sphi 0, %s71
      %s86 = sphi 0, %s72
      %s90 = sphi 0, %s90
      %s92 = sphi 0, %s90
      %s93 = sphi 0, %s92
      %s107 = sphi 0, %s93
      %s111 = sphi 0, %s111
      %s113 = sphi 0, %s111
      %s114 = sphi 0, %s113
      %s128 = sphi 0, %s114
      %s134 = sphi 0, %s136
      %s137 = sphi 0, %s134
      %s138 = sphi 0, %s137
      %s154 = sphi 0, %s138
    $region4: #{cnn_forward_batch.1} parent=1 // loop_header_branch
      %17 = sbr.rel (%p15) target = $region8
    $region5: #{cnn_forward_batch.1} parent=1 // loop_body
      %s19 = ssub.s32 %s14, 1
      %s20 = ssub.s32 %s14, 2
      %s21 = sadd.s32 %s14, 1
      %s22 = ssub.s32 %s14, %s21
      %p23 = scmp.eq.s32.totalorder %s22, 0
      %s25 = sadd.s32 %s24, 1
      %s26 = scalar_select %p23, %s24, %s25
      %p29 = pneg %p23
      %p30 = scmp.eq.s32.totalorder %s14, 3
      %p31 = por %p29, %p30
      %p32 = scmp.ne.s32.totalorder %s24, %s27
      %p33 = scmp.eq.s32.totalorder %s14, 0
      %p34 = por %p32, %p33
      %p35 = scmp.ne.s32.totalorder %s24, %s27
      %p36 = scmp.eq.s32.totalorder %s19, 3
      %p37 = por %p35, %p36
      %p38 = scmp.ne.s32.totalorder %s27, %s28
      %p39 = scmp.eq.s32.totalorder %s19, 0
      %p40 = por %p38, %p39
      %p41 = scmp.ne.s32.totalorder %s27, %s28
      %p42 = scmp.eq.s32.totalorder %s20, 3
      %p43 = por %p41, %p42
      %p45 = scmp.ne.s32.totalorder %s28, %s44
      %p46 = scmp.eq.s32.totalorder %s20, 0
      %p47 = por %p45, %p46
      %s49 = sadd.s32 %s48, 1
      %p52 = scmp.eq.s32.totalorder %s14, 3
      %p53 = scmp.ne.s32.totalorder %s48, %s50
      %p54 = scmp.eq.s32.totalorder %s14, 0
      %p55 = por %p53, %p54
      %p56 = scmp.ne.s32.totalorder %s48, %s50
      %p57 = scmp.eq.s32.totalorder %s19, 3
      %p58 = por %p56, %p57
      %p59 = scmp.ne.s32.totalorder %s50, %s51
      %p60 = scmp.eq.s32.totalorder %s19, 0
      %p61 = por %p59, %p60
      %p62 = scmp.ne.s32.totalorder %s50, %s51
      %p63 = scmp.eq.s32.totalorder %s20, 3
      %p64 = por %p62, %p63
      %p66 = scmp.ne.s32.totalorder %s51, %s65
      %p67 = scmp.eq.s32.totalorder %s20, 0
      %p68 = por %p66, %p67
      %s70 = sadd.s32 %s69, 1
      %p73 = scmp.eq.s32.totalorder %s14, 3
      %p74 = scmp.ne.s32.totalorder %s69, %s71
      %p75 = scmp.eq.s32.totalorder %s14, 0
      %p76 = por %p74, %p75
      %p77 = scmp.ne.s32.totalorder %s69, %s71
      %p78 = scmp.eq.s32.totalorder %s19, 3
      %p79 = por %p77, %p78
      %p80 = scmp.ne.s32.totalorder %s71, %s72
      %p81 = scmp.eq.s32.totalorder %s19, 0
      %p82 = por %p80, %p81
      %p83 = scmp.ne.s32.totalorder %s71, %s72
      %p84 = scmp.eq.s32.totalorder %s20, 3
      %p85 = por %p83, %p84
      %p87 = scmp.ne.s32.totalorder %s72, %s86
      %p88 = scmp.eq.s32.totalorder %s20, 0
      %p89 = por %p87, %p88
      %s91 = sadd.s32 %s90, 1
      %p94 = scmp.eq.s32.totalorder %s14, 3
      %p95 = scmp.ne.s32.totalorder %s90, %s92
      %p96 = scmp.eq.s32.totalorder %s14, 0
      %p97 = por %p95, %p96
      %p98 = scmp.ne.s32.totalorder %s90, %s92
      %p99 = scmp.eq.s32.totalorder %s19, 3
      %p100 = por %p98, %p99
      %p101 = scmp.ne.s32.totalorder %s92, %s93
      %p102 = scmp.eq.s32.totalorder %s19, 0
      %p103 = por %p101, %p102
      %p104 = scmp.ne.s32.totalorder %s92, %s93
      %p105 = scmp.eq.s32.totalorder %s20, 3
      %p106 = por %p104, %p105
      %p108 = scmp.ne.s32.totalorder %s93, %s107
      %p109 = scmp.eq.s32.totalorder %s20, 0
      %p110 = por %p108, %p109
      %s112 = sadd.s32 %s111, 1
      %p115 = scmp.eq.s32.totalorder %s14, 3
      %p116 = scmp.ne.s32.totalorder %s111, %s113
      %p117 = scmp.eq.s32.totalorder %s14, 0
      %p118 = por %p116, %p117
      %p119 = scmp.ne.s32.totalorder %s111, %s113
      %p120 = scmp.eq.s32.totalorder %s19, 3
      %p121 = por %p119, %p120
      %p122 = scmp.ne.s32.totalorder %s113, %s114
      %p123 = scmp.eq.s32.totalorder %s19, 0
      %p124 = por %p122, %p123
      %p125 = scmp.ne.s32.totalorder %s113, %s114
      %p126 = scmp.eq.s32.totalorder %s20, 3
      %p127 = por %p125, %p126
      %p129 = scmp.ne.s32.totalorder %s114, %s128
      %p130 = scmp.eq.s32.totalorder %s20, 0
      %p131 = por %p129, %p130
      %s132 = ssub.s32 %s14, %s21
      %p133 = scmp.eq.s32.totalorder %s132, 0
      %s135 = sadd.s32 %s134, 1
      %s136 = scalar_select %p133, %s134, %s135
      %p139 = pneg %p133
      %p140 = scmp.eq.s32.totalorder %s14, 3
      %p141 = por %p139, %p140
      %p142 = scmp.ne.s32.totalorder %s134, %s137
      %p143 = scmp.eq.s32.totalorder %s14, 0
      %p144 = por %p142, %p143
      %p145 = scmp.ne.s32.totalorder %s134, %s137
      %p146 = scmp.eq.s32.totalorder %s19, 3
      %p147 = por %p145, %p146
      %p148 = scmp.ne.s32.totalorder %s137, %s138
      %p149 = scmp.eq.s32.totalorder %s19, 0
      %p150 = por %p148, %p149
      %p151 = scmp.ne.s32.totalorder %s137, %s138
      %p152 = scmp.eq.s32.totalorder %s20, 3
      %p153 = por %p151, %p152
      %p155 = scmp.ne.s32.totalorder %s138, %s154
      %p156 = scmp.eq.s32.totalorder %s20, 0
      %p157 = por %p155, %p156
      %p158 = scmp.le.s32.totalorder 1, %s14
      %p159 = scmp.lt.s32.totalorder %s14, 5
      %p160 = pnand %p158, %p159
      %p161 = pneg %p160
      // Predicated region
      $region9: #{cnn_forward_batch.1} parent=5 // pred_check
        _
      $region10: #{cnn_forward_batch.1} parent=5 // pred_check_branch
        %163 = sbr.rel (%p160) target = $region12
      $region11: #{cnn_forward_batch.1} parent=5 // pred_region
        %s164 = ssub.s32 %s14, 1
        // Predicated region
        $region13: #{cnn_forward_batch.1} parent=11 // pred_check
          %p165 = pneg %p61
        $region14: #{cnn_forward_batch.1} parent=11 // pred_check_branch
          %167 = sbr.rel (%p165) target = $region16
        $region15: #{cnn_forward_batch.1} parent=11 // pred_region
          _
        $region16: #{cnn_forward_batch.1} parent=11 // pred_fallthru
          _
        // Predicated region
        $region17: #{cnn_forward_batch.1} parent=11 // pred_check
          %p168 = pneg %p82
        $region18: #{cnn_forward_batch.1} parent=11 // pred_check_branch
          %170 = sbr.rel (%p168) target = $region20
        $region19: #{cnn_forward_batch.1} parent=11 // pred_region
          _
        $region20: #{cnn_forward_batch.1} parent=11 // pred_fallthru
          _
        // Predicated region
        $region21: #{cnn_forward_batch.1} parent=11 // pred_check
          %p171 = pneg %p103
        $region22: #{cnn_forward_batch.1} parent=11 // pred_check_branch
          %173 = sbr.rel (%p171) target = $region24
        $region23: #{cnn_forward_batch.1} parent=11 // pred_region
          _
        $region24: #{cnn_forward_batch.1} parent=11 // pred_fallthru
          _
        // Predicated region
        $region25: #{cnn_forward_batch.1} parent=11 // pred_check
          %p174 = pneg %p124
        $region26: #{cnn_forward_batch.1} parent=11 // pred_check_branch
          %176 = sbr.rel (%p174) target = $region28
        $region27: #{cnn_forward_batch.1} parent=11 // pred_region
          _
        $region28: #{cnn_forward_batch.1} parent=11 // pred_fallthru
          _
      $region12: #{cnn_forward_batch.1} parent=5 // pred_fallthru
        _
      %p177 = scmp.lt.s32.totalorder %s14, 4
      // Predicated region
      $region29: #{cnn_forward_batch.1} parent=5 // pred_check
        %p178 = pneg %p177
      $region30: #{cnn_forward_batch.1} parent=5 // pred_check_branch
        %180 = sbr.rel (%p178) target = $region32
      $region31: #{cnn_forward_batch.1} parent=5 // pred_region
        // Predicated region
        $region33: #{cnn_forward_batch.1} parent=31 // pred_check
          %p181 = pneg %p34
        $region34: #{cnn_forward_batch.1} parent=31 // pred_check_branch
          %183 = sbr.rel (%p181) target = $region36
        $region35: #{cnn_forward_batch.1} parent=31 // pred_region
          %p184 = scmp.lt.s32.totalorder %s14, 3
          %s185 = scalar_select %p184, %s14, 3
          %s186 = smul.addr %s185, 11
          %s187 = smul.addr %s186, 8
          %s188 = scalar_lea.vmem %s0, %s187
        $region36: #{cnn_forward_batch.1} parent=31 // pred_fallthru
          _
      $region32: #{cnn_forward_batch.1} parent=5 // pred_fallthru
        _
      %p189 = scmp.le.s32.totalorder 1, %s14
      %p190 = scmp.lt.s32.totalorder %s14, 5
      %p191 = pnand %p189, %p190
      %p192 = pneg %p191
      // Predicated region
      $region37: #{cnn_forward_batch.1} parent=5 // pred_check
        _
      $region38: #{cnn_forward_batch.1} parent=5 // pred_check_branch
        %194 = sbr.rel (%p191) target = $region40
      $region39: #{cnn_forward_batch.1} parent=5 // pred_region
        %s195 = ssub.s32 %s14, 1
        %p196 = scmp.lt.s32.totalorder %s19, 3
        %s197 = scalar_select %p196, %s19, 3
        %s198 = smul.addr %s197, 11
        %s199 = smul.addr %s198, 8
        %s200 = scalar_lea.vmem %s0, %s199
        %p201 = pneg %p40
        %p202 = pneg %p37
        %p203 = pneg %p61
        %p204 = pneg %p58
        %p205 = pneg %p82
        %p206 = pneg %p79
        %p207 = pneg %p103
        %p208 = pneg %p100
        %p209 = pneg %p124
        %p210 = pneg %p121
        %p211 = pneg %p150
        %p212 = pneg %p147
        %s213 = sand.u32 %s137, 1
        %s214 = scalar_lea.sflag [#allocation3], %s213
        %s215 = sand.u32 %s137, 1
        %s216 = scalar_lea.vmem [#allocation2], %s215
        %p217 = scmp.lt.s32.totalorder %s19, 3
        %s218 = scalar_select %p217, %s19, 3
        %s219 = smul.addr %s218, 11
        %s220 = smul.addr %s219, 8
        %s221 = scalar_lea.vmem %s0, %s220
        %v223 = vld [vmem:[%s221] sm:$0xff]
        %v224 = vld [vmem:[%s221 + $0x8] sm:$0xff]
        %v225 = vld [vmem:[%s221 + $0x10] sm:$0xff]
        %v226 = vld [vmem:[%s221 + $0x18] sm:$0xff]
        %v227 = vld [vmem:[%s221 + $0x20] sm:$0xff]
        %v228 = vld [vmem:[%s221 + $0x28] sm:$0xff]
        %v229 = vld [vmem:[%s221 + $0x30] sm:$0xff]
        %v230 = vld [vmem:[%s221 + $0x38] sm:$0xff]
        %v231 = vld [vmem:[%s221 + $0x40] sm:$0xff]
        %v232 = vld [vmem:[%s221 + $0x48] sm:$0xff]
        %v233 = vld [vmem:[%s221 + $0x50] sm:$0x7]
        %v234 = vlaneseq
        %v235 = vand.u32 %v234, 127
        %236 = vset.pattern.permute.xlu0 0
        %237 = vperm.xlu0 %236, %v223
        %v238 = vpop.permute.xlu0 %237
        %239 = vset.pattern.permute.xlu0 0
        %240 = vperm.xlu0 %239, %v224
        %v241 = vpop.permute.xlu0 %240
        %242 = vset.pattern.permute.xlu0 0
        %243 = vperm.xlu0 %242, %v225
        %v244 = vpop.permute.xlu0 %243
        %245 = vset.pattern.permute.xlu0 0
        %246 = vperm.xlu0 %245, %v226
        %v247 = vpop.permute.xlu0 %246
        %248 = vset.pattern.permute.xlu0 0
        %249 = vperm.xlu0 %248, %v227
        %v250 = vpop.permute.xlu0 %249
        %251 = vset.pattern.permute.xlu0 0
        %252 = vperm.xlu0 %251, %v228
        %v253 = vpop.permute.xlu0 %252
        %254 = vset.pattern.permute.xlu0 0
        %255 = vperm.xlu0 %254, %v229
        %v256 = vpop.permute.xlu0 %255
        %257 = vset.pattern.permute.xlu0 0
        %258 = vperm.xlu0 %257, %v230
        %v259 = vpop.permute.xlu0 %258
        %260 = vset.pattern.permute.xlu0 0
        %261 = vperm.xlu0 %260, %v231
        %v262 = vpop.permute.xlu0 %261
        %263 = vset.pattern.permute.xlu0 0
        %264 = vperm.xlu0 %263, %v232
        %v265 = vpop.permute.xlu0 %264
        %266 = vset.pattern.permute.xlu0 0
        %267 = vperm.xlu0 %266, %v233
        %v268 = vpop.permute.xlu0 %267
        %vm269 = vcmp.eq.s32.totalorder %v235, %v238
        %vm270 = vcmp.eq.s32.totalorder %v235, %v241
        %vm271 = vcmp.eq.s32.totalorder %v235, %v244
        %vm272 = vcmp.eq.s32.totalorder %v235, %v247
        %vm273 = vcmp.eq.s32.totalorder %v235, %v250
        %vm274 = vcmp.eq.s32.totalorder %v235, %v253
        %vm275 = vcmp.eq.s32.totalorder %v235, %v256
        %vm276 = vcmp.eq.s32.totalorder %v235, %v259
        %vm277 = vcmp.eq.s32.totalorder %v235, %v262
        %vm278 = vcmp.eq.s32.totalorder %v235, %v265
        %vm279 = vcmp.eq.s32.totalorder %v235, %v268
        %280 = vset.pattern.permute.xlu0 1
        %281 = vperm.xlu0 %280, %v223
        %v282 = vpop.permute.xlu0 %281
        %283 = vset.pattern.permute.xlu0 1
        %284 = vperm.xlu0 %283, %v224
        %v285 = vpop.permute.xlu0 %284
        %286 = vset.pattern.permute.xlu0 1
        %287 = vperm.xlu0 %286, %v225
        %v288 = vpop.permute.xlu0 %287
        %289 = vset.pattern.permute.xlu0 1
        %290 = vperm.xlu0 %289, %v226
        %v291 = vpop.permute.xlu0 %290
        %292 = vset.pattern.permute.xlu0 1
        %293 = vperm.xlu0 %292, %v227
        %v294 = vpop.permute.xlu0 %293
        %295 = vset.pattern.permute.xlu0 1
        %296 = vperm.xlu0 %295, %v228
        %v297 = vpop.permute.xlu0 %296
        %298 = vset.pattern.permute.xlu0 1
        %299 = vperm.xlu0 %298, %v229
        %v300 = vpop.permute.xlu0 %299
        %301 = vset.pattern.permute.xlu0 1
        %302 = vperm.xlu0 %301, %v230
        %v303 = vpop.permute.xlu0 %302
        %304 = vset.pattern.permute.xlu0 1
        %305 = vperm.xlu0 %304, %v231
        %v306 = vpop.permute.xlu0 %305
        %307 = vset.pattern.permute.xlu0 1
        %308 = vperm.xlu0 %307, %v232
        %v309 = vpop.permute.xlu0 %308
        %310 = vset.pattern.permute.xlu0 1
        %311 = vperm.xlu0 %310, %v233
        %v312 = vpop.permute.xlu0 %311
        %vm313 = vcmp.eq.s32.totalorder %v235, %v282
        %vm314 = vcmp.eq.s32.totalorder %v235, %v285
        %vm315 = vcmp.eq.s32.totalorder %v235, %v288
        %vm316 = vcmp.eq.s32.totalorder %v235, %v291
        %vm317 = vcmp.eq.s32.totalorder %v235, %v294
        %vm318 = vcmp.eq.s32.totalorder %v235, %v297
        %vm319 = vcmp.eq.s32.totalorder %v235, %v300
        %vm320 = vcmp.eq.s32.totalorder %v235, %v303
        %vm321 = vcmp.eq.s32.totalorder %v235, %v306
        %vm322 = vcmp.eq.s32.totalorder %v235, %v309
        %vm323 = vcmp.eq.s32.totalorder %v235, %v312
        %vm324 = vmor %vm269, %vm313
        %vm325 = vmor %vm270, %vm314
        %vm326 = vmor %vm271, %vm315
        %vm327 = vmor %vm272, %vm316
        %vm328 = vmor %vm273, %vm317
        %vm329 = vmor %vm274, %vm318
        %vm330 = vmor %vm275, %vm319
        %vm331 = vmor %vm276, %vm320
        %vm332 = vmor %vm277, %vm321
        %vm333 = vmor %vm278, %vm322
        %vm334 = vmor %vm279, %vm323
        %335 = vset.pattern.permute.xlu0 2
        %336 = vperm.xlu0 %335, %v223
        %v337 = vpop.permute.xlu0 %336
        %338 = vset.pattern.permute.xlu0 2
        %339 = vperm.xlu0 %338, %v224
        %v340 = vpop.permute.xlu0 %339
        %341 = vset.pattern.permute.xlu0 2
        %342 = vperm.xlu0 %341, %v225
        %v343 = vpop.permute.xlu0 %342
        %344 = vset.pattern.permute.xlu0 2
        %345 = vperm.xlu0 %344, %v226
        %v346 = vpop.permute.xlu0 %345
        %347 = vset.pattern.permute.xlu0 2
        %348 = vperm.xlu0 %347, %v227
        %v349 = vpop.permute.xlu0 %348
        %350 = vset.pattern.permute.xlu0 2
        %351 = vperm.xlu0 %350, %v228
        %v352 = vpop.permute.xlu0 %351
        %353 = vset.pattern.permute.xlu0 2
        %354 = vperm.xlu0 %353, %v229
        %v355 = vpop.permute.xlu0 %354
        %356 = vset.pattern.permute.xlu0 2
        %357 = vperm.xlu0 %356, %v230
        %v358 = vpop.permute.xlu0 %357
        %359 = vset.pattern.permute.xlu0 2
        %360 = vperm.xlu0 %359, %v231
        %v361 = vpop.permute.xlu0 %360
        %362 = vset.pattern.permute.xlu0 2
        %363 = vperm.xlu0 %362, %v232
        %v364 = vpop.permute.xlu0 %363
        %365 = vset.pattern.permute.xlu0 2
        %366 = vperm.xlu0 %365, %v233
        %v367 = vpop.permute.xlu0 %366
        %vm368 = vcmp.eq.s32.totalorder %v235, %v337
        %vm369 = vcmp.eq.s32.totalorder %v235, %v340
        %vm370 = vcmp.eq.s32.totalorder %v235, %v343
        %vm371 = vcmp.eq.s32.totalorder %v235, %v346
        %vm372 = vcmp.eq.s32.totalorder %v235, %v349
        %vm373 = vcmp.eq.s32.totalorder %v235, %v352
        %vm374 = vcmp.eq.s32.totalorder %v235, %v355
        %vm375 = vcmp.eq.s32.totalorder %v235, %v358
        %vm376 = vcmp.eq.s32.totalorder %v235, %v361
        %vm377 = vcmp.eq.s32.totalorder %v235, %v364
        %vm378 = vcmp.eq.s32.totalorder %v235, %v367
        %vm379 = vmor %vm324, %vm368
        %vm380 = vmor %vm325, %vm369
        %vm381 = vmor %vm326, %vm370
        %vm382 = vmor %vm327, %vm371
        %vm383 = vmor %vm328, %vm372
        %vm384 = vmor %vm329, %vm373
        %vm385 = vmor %vm330, %vm374
        %vm386 = vmor %vm331, %vm375
        %vm387 = vmor %vm332, %vm376
        %vm388 = vmor %vm333, %vm377
        %vm389 = vmor %vm334, %vm378
        %v390 = vsel %vm379, 1, 0
        %v391 = vsel %vm380, 1, 0
        %v392 = vsel %vm381, 1, 0
        %v393 = vsel %vm382, 1, 0
        %v394 = vsel %vm383, 1, 0
        %v395 = vsel %vm384, 1, 0
        %v396 = vsel %vm385, 1, 0
        %v397 = vsel %vm386, 1, 0
        %v398 = vsel %vm387, 1, 0
        %v399 = vsel %vm388, 1, 0
        %v400 = vsel %vm389, 1, 0
        %v401 = vcvt.s32.f32 %v390
        %v402 = vcvt.s32.f32 %v391
        %v403 = vcvt.s32.f32 %v392
        %v404 = vcvt.s32.f32 %v393
        %v405 = vcvt.s32.f32 %v394
        %v406 = vcvt.s32.f32 %v395
        %v407 = vcvt.s32.f32 %v396
        %v408 = vcvt.s32.f32 %v397
        %v409 = vcvt.s32.f32 %v398
        %v410 = vcvt.s32.f32 %v399
        %v411 = vcvt.s32.f32 %v400
        %v412 = vpack.c.bf16 %v402, %v401
        %v413 = vpack.c.bf16 %v404, %v403
        %v414 = vpack.c.bf16 %v406, %v405
        %v415 = vpack.c.bf16 %v408, %v407
        %v416 = vpack.c.bf16 %v410, %v409
        %v417 = vpack.c.bf16 %v411, %v411
        %v418 = vld [vmem:[%s1] sm:$0xff]
        %v419 = vld [vmem:[%s1 + $0x8] sm:$0xff]
        %v420 = vld [vmem:[%s1 + $0x10] sm:$0xff]
        %v421 = vld [vmem:[%s1 + $0x18] sm:$0xff]
        %v422 = vld [vmem:[%s1 + $0x20] sm:$0xff]
        %v423 = vld [vmem:[%s1 + $0x28] sm:$0xff]
        %v424 = vld [vmem:[%s1 + $0x30] sm:$0xff]
        %v425 = vld [vmem:[%s1 + $0x38] sm:$0xff]
        %v426 = vld [vmem:[%s1 + $0x40] sm:$0xff]
        %v427 = vld [vmem:[%s1 + $0x48] sm:$0xff]
        %v428 = vld [vmem:[%s1 + $0x50] sm:$0xff]
        %v429 = vld [vmem:[%s1 + $0x58] sm:$0x11]
        %v442 = vunpack.c.l.b16 %v418
        %v443 = vunpack.c.h.b16 %v418
        %v444 = vunpack.c.l.b16 %v419
        %v445 = vunpack.c.h.b16 %v419
        %v446 = vunpack.c.l.b16 %v420
        %v447 = vunpack.c.h.b16 %v420
        %v448 = vunpack.c.l.b16 %v421
        %v449 = vunpack.c.h.b16 %v421
        %v450 = vunpack.c.l.b16 %v422
        %v451 = vunpack.c.h.b16 %v422
        %v452 = vunpack.c.l.b16 %v423
        %v453 = vunpack.c.h.b16 %v423
        %v454 = vunpack.c.l.b16 %v424
        %v455 = vunpack.c.h.b16 %v424
        %v456 = vunpack.c.l.b16 %v425
        %v457 = vunpack.c.h.b16 %v425
        %v458 = vunpack.c.l.b16 %v426
        %v459 = vunpack.c.h.b16 %v426
        %v460 = vunpack.c.l.b16 %v427
        %v461 = vunpack.c.h.b16 %v427
        %v462 = vunpack.c.l.b16 %v428
        %v463 = vunpack.c.h.b16 %v428
        %v464 = vunpack.c.l.b16 %v429
        %v465 = vunpack.c.h.b16 %v429
        %v466 = vpack.c.b16 %v444, %v442
        %v467 = vpack.c.b16 %v445, %v443
        %v468 = vpack.c.b16 %v448, %v446
        %v469 = vpack.c.b16 %v449, %v447
        %v470 = vpack.c.b16 %v452, %v450
        %v471 = vpack.c.b16 %v453, %v451
        %v472 = vpack.c.b16 %v456, %v454
        %v473 = vpack.c.b16 %v457, %v455
        %v474 = vpack.c.b16 %v460, %v458
        %v475 = vpack.c.b16 %v461, %v459
        %v476 = vpack.c.b16 %v464, %v462
        %v477 = vpack.c.b16 %v465, %v463
        %vm488 = vcmask 736256
        %v490 = vsel %vm488, %v412, 0
        %v493 = vsel %vm488, %v413, 0
        %v496 = vsel %vm488, %v414, 0
        %v499 = vsel %vm488, %v415, 0
        %v502 = vsel %vm488, %v416, 0
        %v505 = vsel %vm488, %v417, 0
        %vm507 = vcmask 1044480
        %v509 = vsel %vm507, %v476, 0
        %v512 = vsel %vm507, %v477, 0
        %514 = vmatprep.subr.bf16.mxu0 0
        %515 = vmatpush1.bf16.msra.mxu0 0
        %516 = vmatprep.subr.bf16.mxu0 0
        %517 = vmatpush1.bf16.msra.mxu0 0
        %518 = vmatprep.subr.bf16.mxu0 %v512
        %519 = vmatpush1.bf16.msra.mxu0 %v509
        %520 = vmatprep.subr.bf16.mxu0 %v475
        %521 = vmatpush1.bf16.msra.mxu0 %v474
        %522 = vmatprep.subr.bf16.mxu0 %v473
        %523 = vmatpush1.bf16.msra.mxu0 %v472
        %524 = vmatprep.subr.bf16.mxu0 %v471
        %525 = vmatpush1.bf16.msra.mxu0 %v470
        %526 = vmatprep.subr.bf16.mxu0 %v469
        %527 = vmatpush1.bf16.msra.mxu0 %v468
        %528 = vmatprep.subr.bf16.mxu0 %v467
        %529 = vmatpush1.bf16.msra.mxu0 %v466
        %530 = vmatprep.subr.bf16.mxu0 0
        %531 = vmatpush2.bf16.msra.mxu0 0
        %532 = vmatprep.subr.bf16.mxu0 0
        %533 = vmatpush2.bf16.msra.mxu0 0
        %534 = vmatprep.subr.bf16.mxu0 0
        %535 = vmatpush2.bf16.msra.mxu0 0
        %536 = vmatprep.subr.bf16.mxu0 0
        %537 = vmatpush2.bf16.msra.mxu0 0
        %538 = vmatprep.subr.bf16.mxu0 0
        %539 = vmatpush2.bf16.msra.mxu0 0
        %540 = vmatprep.subr.bf16.mxu0 0
        %541 = vmatpush2.bf16.msra.mxu0 0
        %542 = vmatprep.subr.bf16.mxu0 0
        %543 = vmatpush2.bf16.msra.mxu0 0
        %544 = vmatprep.subr.bf16.mxu0 0
        %545 = vmatpush2.bf16.msra.mxu0 0
        %546 = vmatprep.mubr.bf16.mxu0 0
        %547 = vmatmul.mubr.bf16.gmra.mxu0 %v490
        %v548 = vpop.f32.mrf.mxu0
        %v549 = vadd.f32 0.0, %v548
        %v550 = vpop.f32.mrf.mxu0
        %v551 = vadd.f32 0.0, %v550
        %v552 = vpop.f32.mrf.mxu0
        %v553 = vadd.f32 0.0, %v552
        %v554 = vpop.f32.mrf.mxu0
        %v555 = vadd.f32 0.0, %v554
        %556 = vmatprep.mubr.bf16.mxu0 0
        %557 = vmatmul.mubr.bf16.gmra.mxu0 %v493
        %v558 = vpop.f32.mrf.mxu0
        %v559 = vadd.f32 0.0, %v558
        %v560 = vpop.f32.mrf.mxu0
        %v561 = vadd.f32 0.0, %v560
        %v562 = vpop.f32.mrf.mxu0
        %v563 = vadd.f32 0.0, %v562
        %v564 = vpop.f32.mrf.mxu0
        %v565 = vadd.f32 0.0, %v564
        %566 = vmatprep.mubr.bf16.mxu0 0
        %567 = vmatmul.mubr.bf16.gmra.mxu0 %v496
        %v568 = vpop.f32.mrf.mxu0
        %v569 = vadd.f32 0.0, %v568
        %v570 = vpop.f32.mrf.mxu0
        %v571 = vadd.f32 0.0, %v570
        %v572 = vpop.f32.mrf.mxu0
        %v573 = vadd.f32 0.0, %v572
        %v574 = vpop.f32.mrf.mxu0
        %v575 = vadd.f32 0.0, %v574
        %576 = vmatprep.mubr.bf16.mxu0 0
        %577 = vmatmul.mubr.bf16.gmra.mxu0 %v499
        %v578 = vpop.f32.mrf.mxu0
        %v579 = vadd.f32 0.0, %v578
        %v580 = vpop.f32.mrf.mxu0
        %v581 = vadd.f32 0.0, %v580
        %v582 = vpop.f32.mrf.mxu0
        %v583 = vadd.f32 0.0, %v582
        %v584 = vpop.f32.mrf.mxu0
        %v585 = vadd.f32 0.0, %v584
        %586 = vmatprep.mubr.bf16.mxu0 0
        %587 = vmatmul.mubr.bf16.gmra.mxu0 %v502
        %v588 = vpop.f32.mrf.mxu0
        %v589 = vadd.f32 0.0, %v588
        %v590 = vpop.f32.mrf.mxu0
        %v591 = vadd.f32 0.0, %v590
        %v592 = vpop.f32.mrf.mxu0
        %v593 = vadd.f32 0.0, %v592
        %v594 = vpop.f32.mrf.mxu0
        %v595 = vadd.f32 0.0, %v594
        %596 = vmatprep.mubr.bf16.mxu0 0
        %597 = vmatmul.mubr.bf16.gmra.mxu0 %v505
        %v598 = vpop.f32.mrf.mxu0
        %v599 = vadd.f32 0.0, %v598
        %v600 = vpop.f32.mrf.mxu0
        %v601 = vadd.f32 0.0, %v600
        %v602 = vpop.f32.mrf.mxu0
        %v603 = vpop.f32.mrf.mxu0
        %604 = vdwg.mxu0
        %vm616 = vcmask 1046528
        %v617 = vrot.slane %v549, 1
        %v618 = vrot.slane %v553, 1
        %v619 = vsel %vm616, %v617, %v618
        %v620 = vrot.slane %v559, 1
        %v621 = vsel %vm616, %v618, %v620
        %v622 = vrot.slane %v563, 1
        %v623 = vsel %vm616, %v620, %v622
        %v624 = vrot.slane %v569, 1
        %v625 = vsel %vm616, %v622, %v624
        %v626 = vrot.slane %v573, 1
        %v627 = vsel %vm616, %v624, %v626
        %v628 = vrot.slane %v579, 1
        %v629 = vsel %vm616, %v626, %v628
        %v630 = vrot.slane %v583, 1
        %v631 = vsel %vm616, %v628, %v630
        %v632 = vrot.slane %v589, 1
        %v633 = vsel %vm616, %v630, %v632
        %v634 = vrot.slane %v593, 1
        %v635 = vsel %vm616, %v632, %v634
        %v636 = vrot.slane %v599, 1
        %v637 = vsel %vm616, %v634, %v636
        %638 = vrot.lane.b32.xlu0 %v619, 80
        %v639 = vpop.permute.xlu0 %638
        %640 = vrot.lane.b32.xlu0 %v621, 80
        %v641 = vpop.permute.xlu0 %640
        %642 = vrot.lane.b32.xlu0 %v623, 80
        %v643 = vpop.permute.xlu0 %642
        %644 = vrot.lane.b32.xlu0 %v625, 80
        %v645 = vpop.permute.xlu0 %644
        %646 = vrot.lane.b32.xlu0 %v627, 80
        %v647 = vpop.permute.xlu0 %646
        %648 = vrot.lane.b32.xlu0 %v629, 80
        %v649 = vpop.permute.xlu0 %648
        %650 = vrot.lane.b32.xlu0 %v631, 80
        %v651 = vpop.permute.xlu0 %650
        %652 = vrot.lane.b32.xlu0 %v633, 80
        %v653 = vpop.permute.xlu0 %652
        %654 = vrot.lane.b32.xlu0 %v635, 80
        %v655 = vpop.permute.xlu0 %654
        %656 = vrot.lane.b32.xlu0 %v637, 80
        %v657 = vpop.permute.xlu0 %656
        %658 = vrot.lane.b32.xlu0 %v636, 80
        %v659 = vpop.permute.xlu0 %658
        %v671 = vadd.f32 %v549, %v639
        %v672 = vadd.f32 %v553, %v641
        %v673 = vadd.f32 %v559, %v643
        %v674 = vadd.f32 %v563, %v645
        %v675 = vadd.f32 %v569, %v647
        %v676 = vadd.f32 %v573, %v649
        %v677 = vadd.f32 %v579, %v651
        %v678 = vadd.f32 %v583, %v653
        %v679 = vadd.f32 %v589, %v655
        %v680 = vadd.f32 %v593, %v657
        %v681 = vadd.f32 %v599, %v659
        %vm693 = vcmask 1045504
        %v694 = vrot.slane %v549, 2
        %v695 = vrot.slane %v553, 2
        %v696 = vsel %vm693, %v694, %v695
        %v697 = vrot.slane %v551, 2
        %v698 = vrot.slane %v555, 2
        %v699 = vsel %vm693, %v697, %v698
        %v700 = vrot.slane %v559, 2
        %v701 = vsel %vm693, %v695, %v700
        %v702 = vrot.slane %v561, 2
        %v703 = vsel %vm693, %v698, %v702
        %v704 = vrot.slane %v563, 2
        %v705 = vsel %vm693, %v700, %v704
        %v706 = vrot.slane %v565, 2
        %v707 = vsel %vm693, %v702, %v706
        %v708 = vrot.slane %v569, 2
        %v709 = vsel %vm693, %v704, %v708
        %v710 = vrot.slane %v571, 2
        %v711 = vsel %vm693, %v706, %v710
        %v712 = vrot.slane %v573, 2
        %v713 = vsel %vm693, %v708, %v712
        %v714 = vrot.slane %v575, 2
        %v715 = vsel %vm693, %v710, %v714
        %v716 = vrot.slane %v579, 2
        %v717 = vsel %vm693, %v712, %v716
        %v718 = vrot.slane %v581, 2
        %v719 = vsel %vm693, %v714, %v718
        %v720 = vrot.slane %v583, 2
        %v721 = vsel %vm693, %v716, %v720
        %v722 = vrot.slane %v585, 2
        %v723 = vsel %vm693, %v718, %v722
        %v724 = vrot.slane %v589, 2
        %v725 = vsel %vm693, %v720, %v724
        %v726 = vrot.slane %v591, 2
        %v727 = vsel %vm693, %v722, %v726
        %v728 = vrot.slane %v593, 2
        %v729 = vsel %vm693, %v724, %v728
        %v730 = vrot.slane %v595, 2
        %v731 = vsel %vm693, %v726, %v730
        %v732 = vrot.slane %v599, 2
        %v733 = vsel %vm693, %v728, %v732
        %v734 = vrot.slane %v601, 2
        %v735 = vsel %vm693, %v730, %v734
        %736 = vrot.lane.b32.xlu0 %v696, 32
        %v737 = vpop.permute.xlu0 %736
        %738 = vrot.lane.b32.xlu0 %v699, 32
        %v739 = vpop.permute.xlu0 %738
        %740 = vrot.lane.b32.xlu0 %v701, 32
        %v741 = vpop.permute.xlu0 %740
        %742 = vrot.lane.b32.xlu0 %v703, 32
        %v743 = vpop.permute.xlu0 %742
        %744 = vrot.lane.b32.xlu0 %v705, 32
        %v745 = vpop.permute.xlu0 %744
        %746 = vrot.lane.b32.xlu0 %v707, 32
        %v747 = vpop.permute.xlu0 %746
        %748 = vrot.lane.b32.xlu0 %v709, 32
        %v749 = vpop.permute.xlu0 %748
        %750 = vrot.lane.b32.xlu0 %v711, 32
        %v751 = vpop.permute.xlu0 %750
        %752 = vrot.lane.b32.xlu0 %v713, 32
        %v753 = vpop.permute.xlu0 %752
        %754 = vrot.lane.b32.xlu0 %v715, 32
        %v755 = vpop.permute.xlu0 %754
        %756 = vrot.lane.b32.xlu0 %v717, 32
        %v757 = vpop.permute.xlu0 %756
        %758 = vrot.lane.b32.xlu0 %v719, 32
        %v759 = vpop.permute.xlu0 %758
        %760 = vrot.lane.b32.xlu0 %v721, 32
        %v761 = vpop.permute.xlu0 %760
        %762 = vrot.lane.b32.xlu0 %v723, 32
        %v763 = vpop.permute.xlu0 %762
        %764 = vrot.lane.b32.xlu0 %v725, 32
        %v765 = vpop.permute.xlu0 %764
        %766 = vrot.lane.b32.xlu0 %v727, 32
        %v767 = vpop.permute.xlu0 %766
        %768 = vrot.lane.b32.xlu0 %v729, 32
        %v769 = vpop.permute.xlu0 %768
        %770 = vrot.lane.b32.xlu0 %v731, 32
        %v771 = vpop.permute.xlu0 %770
        %772 = vrot.lane.b32.xlu0 %v733, 32
        %v773 = vpop.permute.xlu0 %772
        %774 = vrot.lane.b32.xlu0 %v735, 32
        %v775 = vpop.permute.xlu0 %774
        %776 = vrot.lane.b32.xlu0 %v732, 32
        %v777 = vpop.permute.xlu0 %776
        %778 = vrot.lane.b32.xlu0 %v734, 32
        %v779 = vpop.permute.xlu0 %778
        %vm780 = vcmask 261120
        %v781 = vsel %vm780, %v737, %v739
        %v782 = vsel %vm780, %v741, %v743
        %v783 = vsel %vm780, %v745, %v747
        %v784 = vsel %vm780, %v749, %v751
        %v785 = vsel %vm780, %v753, %v755
        %v786 = vsel %vm780, %v757, %v759
        %v787 = vsel %vm780, %v761, %v763
        %v788 = vsel %vm780, %v765, %v767
        %v789 = vsel %vm780, %v769, %v771
        %v790 = vsel %vm780, %v773, %v775
        %v791 = vsel %vm780, %v777, %v779
        %v803 = vadd.f32 %v671, %v781
        %v804 = vadd.f32 %v672, %v782
        %v805 = vadd.f32 %v673, %v783
        %v806 = vadd.f32 %v674, %v784
        %v807 = vadd.f32 %v675, %v785
        %v808 = vadd.f32 %v676, %v786
        %v809 = vadd.f32 %v677, %v787
        %v810 = vadd.f32 %v678, %v788
        %v811 = vadd.f32 %v679, %v789
        %v812 = vadd.f32 %v680, %v790
        %v813 = vadd.f32 %v681, %v791
        %v814 = vld [vmem:[%s2] sm:$0x1]
        %v816 = vlaneseq
        %v817 = vshrl.u32 %v816, 7
        %v818 = vsub.s32 0, %v817
        %v819 = vrot.slane %v814, %v818
        %v821 = vadd.f32 %v803, %v819
        %v822 = vadd.f32 %v804, %v819
        %v823 = vadd.f32 %v805, %v819
        %v824 = vadd.f32 %v806, %v819
        %v825 = vadd.f32 %v807, %v819
        %v826 = vadd.f32 %v808, %v819
        %v827 = vadd.f32 %v809, %v819
        %v828 = vadd.f32 %v810, %v819
        %v829 = vadd.f32 %v811, %v819
        %v830 = vadd.f32 %v812, %v819
        %v831 = vadd.f32 %v813, %v819
        %v832 = vmax.f32 %v821, 0.0
        %v833 = vmax.f32 %v822, 0.0
        %v834 = vmax.f32 %v823, 0.0
        %v835 = vmax.f32 %v824, 0.0
        %v836 = vmax.f32 %v825, 0.0
        %v837 = vmax.f32 %v826, 0.0
        %v838 = vmax.f32 %v827, 0.0
        %v839 = vmax.f32 %v828, 0.0
        %v840 = vmax.f32 %v829, 0.0
        %v841 = vmax.f32 %v830, 0.0
        %v842 = vmax.f32 %v831, 0.0
        %vm843 = vcmask 392192
        %v844 = vsel %vm843, %v832, -inf
        %v845 = vsel %vm843, %v833, -inf
        %v846 = vsel %vm843, %v834, -inf
        %v847 = vsel %vm843, %v835, -inf
        %v848 = vsel %vm843, %v836, -inf
        %v849 = vmax.f32 %v844, %v848
        %v850 = vsel %vm843, %v837, -inf
        %v851 = vmax.f32 %v845, %v850
        %v852 = vsel %vm843, %v838, -inf
        %v853 = vmax.f32 %v846, %v852
        %v854 = vsel %vm843, %v839, -inf
        %v855 = vmax.f32 %v847, %v854
        %v856 = vsel %vm843, %v840, -inf
        %v857 = vmax.f32 %v849, %v856
        %v858 = vsel %vm843, %v841, -inf
        %v859 = vmax.f32 %v851, %v858
        %vm860 = vcmask 385024
        %v861 = vsel %vm860, %v842, -inf
        %v862 = vmax.f32 %v853, %v861
        %v863 = vmax.f32 %v857, %v859
        %v864 = vmax.f32 %v862, %v855
        %v865 = vmax.f32 %v863, %v864
        %v866 = vrot.slane %v865, 4
        %v867 = vmax.f32 %v865, %v866
        %v868 = vrot.slane %v867, 2
        %v869 = vmax.f32 %v867, %v868
        %v870 = vrot.slane %v869, 1
        %v871 = vmax.f32 %v869, %v870
        %873 = vrot.lane.b32.xlu0 %v871, 112
        %v874 = vpop.permute.xlu0 %873
        %v876 = vmax.f32 %v871, %v874
        %877 = vrot.lane.b32.xlu0 %v871, 96
        %v878 = vpop.permute.xlu0 %877
        %v880 = vmax.f32 %v876, %v878
        %v881 = vpack.c.bf16 %v880, %v880
        %v882 = vld [vmem:[%s3] sm:$0xf]
        %v883 = vld [vmem:[%s3 + $0x4] sm:$0xf]
        %v884 = vld [vmem:[%s4] sm:$0x1]
        %v887 = vunpack.c.l.b16 %v882
        %v888 = vunpack.c.l.b16 %v883
        %v889 = vpack.c.b16 %v888, %v887
        %vm891 = vcmask 130048
        %v893 = vsel %vm891, %v881, 0
        %895 = vmatprep.subr.bf16.mxu0 0
        %896 = vmatpush1.bf16.msra.mxu0 0
        %897 = vmatprep.subr.bf16.mxu0 0
        %898 = vmatpush1.bf16.msra.mxu0 0
        %899 = vmatprep.subr.bf16.mxu0 0
        %900 = vmatpush1.bf16.msra.mxu0 0
        %901 = vmatprep.subr.bf16.mxu0 0
        %902 = vmatpush1.bf16.msra.mxu0 0
        %903 = vmatprep.subr.bf16.mxu0 0
        %904 = vmatpush1.bf16.msra.mxu0 0
        %905 = vmatprep.subr.bf16.mxu0 0
        %906 = vmatpush1.bf16.msra.mxu0 0
        %907 = vmatprep.subr.bf16.mxu0 0
        %908 = vmatpush1.bf16.msra.mxu0 0
        %909 = vmatprep.subr.bf16.mxu0 0
        %910 = vmatpush1.bf16.msra.mxu0 %v889
        %911 = vmatprep.subr.bf16.mxu0 0
        %912 = vmatpush2.bf16.msra.mxu0 0
        %913 = vmatprep.subr.bf16.mxu0 0
        %914 = vmatpush2.bf16.msra.mxu0 0
        %915 = vmatprep.subr.bf16.mxu0 0
        %916 = vmatpush2.bf16.msra.mxu0 0
        %917 = vmatprep.subr.bf16.mxu0 0
        %918 = vmatpush2.bf16.msra.mxu0 0
        %919 = vmatprep.subr.bf16.mxu0 0
        %920 = vmatpush2.bf16.msra.mxu0 0
        %921 = vmatprep.subr.bf16.mxu0 0
        %922 = vmatpush2.bf16.msra.mxu0 0
        %923 = vmatprep.subr.bf16.mxu0 0
        %924 = vmatpush2.bf16.msra.mxu0 0
        %925 = vmatprep.subr.bf16.mxu0 0
        %926 = vmatpush2.bf16.msra.mxu0 0
        %927 = vmatprep.mubr.bf16.mxu0 0
        %928 = vmatmul.mubr.bf16.gmra.mxu0 %v893
        %v929 = vpop.f32.mrf.mxu0
        %v930 = vadd.f32 %v884, %v929
        %v931 = vpop.f32.mrf.mxu0
        %v932 = vpop.f32.mrf.mxu0
        %v933 = vpop.f32.mrf.mxu0
        %934 = vdwg.mxu0
        %vm935 = vcmask 32768
        %v936 = vsel %vm935, %v930, -inf
        %937 = vmax.xlane.f32.xlu0 %v936
        %v938 = vpop.xlane.xlu0 %937
        %v939 = vsub.f32 %v930, %v938
        %v940 = vmul.f32 %v939, 1.442695
        %v941 = vpow.pop %v940
        %v942 = vsel %vm935, %v941, 0.0
        %943 = vadd.xlane.f32.xlu0 %v942
        %v944 = vpop.xlane.xlu0 %943
        %v945 = vrcp.pop %v944
        %v946 = vmul.f32 %v941, %v945
        %947 = vst.msk [vmem:[%s216] sm:$0x1] %vm935, %v946
        %s948 = sand.u32 %s137, 1
        %s949 = scalar_lea.sflag [#allocation3], %s948
        %s950 = sand.u32 %s137, 1
        %s951 = scalar_lea.vmem [#allocation2], %s950
        // Predicated region
        $region41: #{cnn_forward_batch.1} parent=39 // pred_check
          %p952 = pneg %p147
        $region42: #{cnn_forward_batch.1} parent=39 // pred_check_branch
          %954 = sbr.rel (%p952) target = $region44
        $region43: #{cnn_forward_batch.1} parent=39 // pred_region
          %s956 = ssub.s32 16, 16
          %957 = vsyncadd %s949, %s956
          %s958 = smul.addr %s19, 16
          %s959 = scalar_lea.hbm %s5, %s958
          %s961 = sshll.u32 %s951, 4
          %s962 = int_to_ptr.vmem [resolvable:$true] %s961
          %964 = dma.vmem_to_hbm [thread:$0]  %s962, 16, %s959, %s949
        $region44: #{cnn_forward_batch.1} parent=39 // pred_fallthru
          _
      $region40: #{cnn_forward_batch.1} parent=5 // pred_fallthru
        _
      %p965 = scmp.le.s32.totalorder 2, %s14
      // Predicated region
      $region45: #{cnn_forward_batch.1} parent=5 // pred_check
        %p966 = pneg %p965
      $region46: #{cnn_forward_batch.1} parent=5 // pred_check_branch
        %968 = sbr.rel (%p966) target = $region48
      $region47: #{cnn_forward_batch.1} parent=5 // pred_region
        %s969 = ssub.s32 %s14, 2
        // Predicated region
        $region49: #{cnn_forward_batch.1} parent=47 // pred_check
          %p970 = pneg %p153
        $region50: #{cnn_forward_batch.1} parent=47 // pred_check_branch
          %972 = sbr.rel (%p970) target = $region52
        $region51: #{cnn_forward_batch.1} parent=47 // pred_region
          %s973 = sand.u32 %s138, 1
          %s974 = scalar_lea.sflag [#allocation3], %s973
          %s975 = sand.u32 %s138, 1
          %s976 = scalar_lea.vmem [#allocation2], %s975
          %977 = dma.done %s974, 16
        $region52: #{cnn_forward_batch.1} parent=47 // pred_fallthru
          _
      $region48: #{cnn_forward_batch.1} parent=5 // pred_fallthru
        _
    $region6: #{cnn_forward_batch.1} parent=1 // loop_footer
      %s18 = sadd.s32 1, %s14
    $region7: #{cnn_forward_batch.1} parent=1 // loop_footer_branch
      %13 = sbr.rel target = $region3
    $region8: #{cnn_forward_batch.1} parent=1 // loop_exit
      _
    %978 = vsyncpa [#allocation3], 1
    %s979 = scalar_lea.sflag [#allocation3], 1
    %980 = vsyncpa %s979, 1

</llo_original>
